<compile_context>
chip_gen: v6e
topology: v6e:2x2x1
jax: 0.10.0
libtpu: 0.0.40
codegen_flags: <defaults>
</compile_context>

<pallas_src>
import jax
import jax.numpy as jnp
import numpy as np
from jax.experimental import pallas as pl
from jax.experimental.pallas import tpu as pltpu


def _vmem_capacity_bytes():
    try:
        info = pltpu.get_tpu_info()
        cap = getattr(info, "vmem_capacity_bytes", None)
        if cap:
            return int(cap)
    except Exception:
        pass
    return 64 << 20  # conservative fallback (v7x per-TC VMEM)


def _bf16_apply_ok():
    # bf16 VALU exists on v6e / v7x only; v5e and older must upcast to f32.
    try:
        kind = jax.devices()[0].device_kind.lower()
        return ("v6" in kind) or ("v7" in kind)
    except Exception:
        return False


def _fused_kernel(eps, inv_n, pad_count, apply_dtype):
    def kernel(x_ref, wb_ref, meta_ref, out_ref, rescale_ref, rebias_ref):
        # ---- pass 1: per-sample mean (zero-padded lanes add 0 to the sum) ----
        row_sum = jnp.sum(x_ref[...].astype(jnp.float32), axis=2, keepdims=True)   # (TB,C,1)
        mean = jnp.sum(row_sum, axis=1, keepdims=True) * inv_n                     # (TB,1,1)

        # ---- pass 2: centered variance.  Data is VMEM-resident, so re-reading
        # x_ref is HBM-free; each zero pad contributes mean^2, removed exactly.
        d = x_ref[...].astype(jnp.float32) - mean
        row_ssq = jnp.sum(d * d, axis=2, keepdims=True)                            # (TB,C,1)
        ssq = jnp.sum(row_ssq, axis=1, keepdims=True) - pad_count * (mean * mean)  # (TB,1,1)
        var = jnp.maximum(ssq * inv_n, 0.0)
        std = jnp.sqrt(var + eps)
        inv_std = 1.0 / std          # same 1/std form as the reference

        # ---- fold weight/bias into one per-channel FMA ----
        wb = wb_ref[...].astype(jnp.float32)        # (C, 2)
        w = wb[:, 0:1][None]                        # (1, C, 1)
        b = wb[:, 1:2][None]
        scale_f = w * inv_std                       # (TB, C, 1)
        shift_f = b - mean * scale_f                # (TB, C, 1)
        scale = scale_f.astype(apply_dtype)
        shift = shift_f.astype(apply_dtype)

        # ---- pass 3: apply.  Re-index x_ref (don't hold a full-block f32 temp
        # across phases); bf16 FMA on chips with a bf16 VPU.
        out_ref[...] = (x_ref[...].astype(apply_dtype) * scale + shift
                        ).astype(out_ref.dtype)

        # ---- meta heads: 1x1 conv of a per-sample scalar == w*scalar + b,
        # produced lane-dense as (TB, 1, C).
        meta = meta_ref[...].astype(jnp.float32)    # (4, C)
        w1 = meta[0:1, :][None]                     # (1, 1, C)
        b1 = meta[1:2, :][None]
        w2 = meta[2:3, :][None]
        b2 = meta[3:4, :][None]
        rescale_ref[...] = (w1 * std + b1).astype(rescale_ref.dtype)
        rebias_ref[...] = (w2 * mean + b2).astype(rebias_ref.dtype)

    return kernel


def _stats_kernel(x_ref, stat_ref):
    # Accumulate per-sample sum / sum-of-squares across HW tiles (P3 pattern).
    t = pl.program_id(1)

    @pl.when(t == 0)
    def _():
        stat_ref[...] = jnp.zeros_like(stat_ref)

    # Re-index x_ref per use so no full-tile f32 temp has to stay live.
    s = jnp.sum(x_ref[...].astype(jnp.float32))
    s2 = jnp.sum(jnp.square(x_ref[...].astype(jnp.float32)))
    stat_ref[:, 0:1, :] = stat_ref[:, 0:1, :] + s
    stat_ref[:, 1:2, :] = stat_ref[:, 1:2, :] + s2


def _apply_kernel(apply_dtype):
    def kernel(x_ref, scale_ref, shift_ref, out_ref):
        scale = scale_ref[...].astype(apply_dtype)   # (1, C, 1)
        shift = shift_ref[...].astype(apply_dtype)
        out_ref[...] = (x_ref[...].astype(apply_dtype) * scale + shift
                        ).astype(out_ref.dtype)
    return kernel


def layernorm_r(x, weight, bias, w1, b1, w2, b2, eps=1e-5,
                *, _force_tiled=False, _block_target_bytes=2 << 20):
    """x: (B, C, H, W) -> (out (B,C,H,W), rescale (B,C,1,1), rebias (B,C,1,1))."""
    B, C, H, W = x.shape
    HW = H * W
    HWp = ((HW + 127) // 128) * 128           # lane-dense main-output stores
    inv_n = 1.0 / float(C * HW)
    pad_count = float(C * (HWp - HW))
    itemsize = x.dtype.itemsize

    x2 = x.reshape(B, C, HW)
    if HWp != HW:
        x2 = jnp.pad(x2, ((0, 0), (0, 0), (0, HWp - HW)))

    cap = _vmem_capacity_bytes()
    apply_dtype = (x.dtype if (x.dtype == jnp.bfloat16 and _bf16_apply_ok())
                   else jnp.float32)

    per_in = C * HWp * itemsize               # one sample's (padded) input block
    per_f32 = C * HWp * 4
    # Sample resident: double-buffered in+out blocks + streamed f32 temporaries.
    fused_ok = (4 * per_in + 2 * per_f32 + (2 << 20)) <= int(0.7 * cap)

    if fused_ok and not _force_tiled:
        # ------- fused single-call path: block the batch axis (~2 MiB) -------
        divisors = [dd for dd in range(1, B + 1) if B % dd == 0]
        fitting = [dd for dd in divisors if dd * per_in <= _block_target_bytes] or [1]
        TB = max(fitting)
        if B // TB < 2:                        # keep >=2 grid steps (v7x megacore)
            two_step = [dd for dd in fitting if B // dd >= 2]
            if two_step:
                TB = max(two_step)
        grid = (B // TB,)

        # pack the six per-channel parameter vectors into two small DMAs
        wb = jnp.stack([weight.reshape(C), bias.reshape(C)],
                       axis=1).astype(jnp.float32)                     # (C, 2)
        meta = jnp.stack([w1.reshape(C), b1.reshape(C),
                          w2.reshape(C), b2.reshape(C)],
                         axis=0).astype(jnp.float32)                   # (4, C)

        needed = 4 * TB * per_in + 2 * TB * per_f32 + (2 << 20)
        vlim = int(min(max(needed, 32 << 20), int(0.75 * cap)))        # per-gen cap

        out, rescale, rebias = pl.pallas_call(
            _fused_kernel(float(eps), inv_n, pad_count, apply_dtype),
            out_shape=(
                jax.ShapeDtypeStruct((B, C, HWp), x.dtype),
                jax.ShapeDtypeStruct((B, 1, C), x.dtype),   # lane-dense meta outs
                jax.ShapeDtypeStruct((B, 1, C), x.dtype),
            ),
            grid_spec=pltpu.PrefetchScalarGridSpec(
                num_scalar_prefetch=0,
                grid=grid,
                in_specs=[
                    pl.BlockSpec((TB, C, HWp), lambda b: (b, 0, 0)),
                    pl.BlockSpec((C, 2), lambda b: (0, 0)),
                    pl.BlockSpec((4, C), lambda b: (0, 0)),
                ],
                out_specs=[
                    pl.BlockSpec((TB, C, HWp), lambda b: (b, 0, 0)),
                    pl.BlockSpec((TB, 1, C), lambda b: (b, 0, 0)),
                    pl.BlockSpec((TB, 1, C), lambda b: (b, 0, 0)),
                ],
            ),
            compiler_params=pltpu.CompilerParams(
                dimension_semantics=("parallel",),
                vmem_limit_bytes=vlim,
            ),
        )(x2, wb, meta)

        if HWp != HW:
            out = out[:, :, :HW]
        return (out.reshape(B, C, H, W),
                rescale.reshape(B, C, 1, 1),
                rebias.reshape(B, C, 1, 1))

    # ---- tiled two-call path: sample too large to stay VMEM-resident (v7x) ----
    lanes = HWp // 128
    per128 = C * 128 * itemsize
    d_max = max(1, _block_target_bytes // per128)
    dlanes = max(dd for dd in range(1, lanes + 1) if lanes % dd == 0 and dd <= d_max)
    Thw = 128 * dlanes
    nT = HWp // Thw

    # Pass 1: per-sample sum / sumsq (single-pass here; a centered second pass
    # would cost a third full HBM sweep).
    stats = pl.pallas_call(
        _stats_kernel,
        out_shape=jax.ShapeDtypeStruct((B, 2, 128), jnp.float32),
        grid_spec=pltpu.PrefetchScalarGridSpec(
            num_scalar_prefetch=0,
            grid=(B, nT),
            in_specs=[pl.BlockSpec((1, C, Thw), lambda b, t: (b, 0, t))],
            out_specs=pl.BlockSpec((1, 2, 128), lambda b, t: (b, 0, 0)),
        ),
        compiler_params=pltpu.CompilerParams(
            dimension_semantics=("parallel", "arbitrary")),
    )(x2)

    s = stats[:, 0, 0]
    s2 = stats[:, 1, 0]
    mean = s * inv_n                                       # (B,)  zero pads add 0
    var = jnp.maximum(s2 * inv_n - mean * mean, 0.0)
    std = jnp.sqrt(var + eps)
    inv_std = 1.0 / std

    wf = weight.reshape(C).astype(jnp.float32)
    bf = bias.reshape(C).astype(jnp.float32)
    scale = wf[None, :] * inv_std[:, None]                 # (B, C)
    shift = bf[None, :] - mean[:, None] * scale            # (B, C)

    # Pass 2: streamed normalize+affine.
    out = pl.pallas_call(
        _apply_kernel(apply_dtype),
        out_shape=jax.ShapeDtypeStruct((B, C, HWp), x.dtype),
        grid_spec=pltpu.PrefetchScalarGridSpec(
            num_scalar_prefetch=0,
            grid=(B, nT),
            in_specs=[
                pl.BlockSpec((1, C, Thw), lambda b, t: (b, 0, t)),
                pl.BlockSpec((1, C, 1), lambda b, t: (b, 0, 0)),
                pl.BlockSpec((1, C, 1), lambda b, t: (b, 0, 0)),
            ],
            out_specs=pl.BlockSpec((1, C, Thw), lambda b, t: (b, 0, t)),
        ),
        compiler_params=pltpu.CompilerParams(
            dimension_semantics=("parallel", "parallel")),
    )(x2, scale[:, :, None], shift[:, :, None])

    if HWp != HW:
        out = out[:, :, :HW]
    rescale = (w1.reshape(C)[None, :].astype(jnp.float32) * std[:, None]
               + b1.reshape(C)[None, :].astype(jnp.float32)).astype(x.dtype)
    rebias = (w2.reshape(C)[None, :].astype(jnp.float32) * mean[:, None]
              + b2.reshape(C)[None, :].astype(jnp.float32)).astype(x.dtype)
    return (out.reshape(B, C, H, W),
            rescale.reshape(B, C, 1, 1),
            rebias.reshape(B, C, 1, 1))


def _reference(x, weight, bias, w1, b1, w2, b2, eps=1e-5):
    xf = x.astype(jnp.float32)
    mean = jnp.mean(xf, axis=(1, 2, 3), keepdims=True)
    std = jnp.sqrt(jnp.mean((xf - mean) ** 2, axis=(1, 2, 3), keepdims=True) + eps)
    norm = (xf - mean) / std
    out = norm * weight.reshape(1, -1, 1, 1) + bias.reshape(1, -1, 1, 1)
    rescale = w1.reshape(1, -1, 1, 1) * std + b1.reshape(1, -1, 1, 1)
    rebias = w2.reshape(1, -1, 1, 1) * mean + b2.reshape(1, -1, 1, 1)
    return out, rescale, rebias


if __name__ == "__main__":
    eps = 1e-5
    key = jax.random.PRNGKey(0)
    kx, k1, k2, kp = jax.random.split(key, 4)

    def make_params(C):
        weight = jnp.ones((C,), jnp.float32)               # ones((1,dim,1,1))
        bias = jnp.zeros((C,), jnp.float32)                # zeros((1,dim,1,1))
        w1 = 0.02 * jax.random.truncated_normal(k1, -2.0, 2.0, (C,), jnp.float32)
        b1 = jnp.ones((C,), jnp.float32)                   # constant_(meta1.bias, 1)
        w2 = 0.02 * jax.random.truncated_normal(k2, -2.0, 2.0, (C,), jnp.float32)
        b2 = jnp.zeros((C,), jnp.float32)                  # constant_(meta2.bias, 0)
        return weight, bias, w1, b1, w2, b2

    def check(x, params, atol, rtol, **kw):
        out, rescale, rebias = layernorm_r(x, *params, eps=eps, **kw)
        jax.block_until_ready((out, rescale, rebias))
        ro, rs, rb = _reference(x, *params, eps=eps)
        assert np.allclose(np.asarray(out.astype(jnp.float32)), np.asarray(ro),
                           atol=atol, rtol=rtol)
        assert np.allclose(np.asarray(rescale.astype(jnp.float32)), np.asarray(rs),
                           atol=atol, rtol=rtol)
        assert np.allclose(np.asarray(rebias.astype(jnp.float32)), np.asarray(rb),
                           atol=atol, rtol=rtol)

    # 1) main demo: fused batch-blocked path, f32
    B, C, H, W = 2, 4, 16, 16
    params = make_params(C)
    x = jax.random.normal(kx, (B, C, H, W), dtype=jnp.float32)
    check(x, params, 2e-5, 2e-5)

    # 2) non-128-multiple spatial size (lane padding path) with odd channel count
    xp = jax.random.normal(kp, (2, 3, 10, 10), dtype=jnp.float32)
    check(xp, make_params(3), 2e-5, 2e-5)

    # 3) tiled large-sample path (forced here with tiny tiles so it is exercised)
    check(x, params, 2e-5, 2e-5, _force_tiled=True, _block_target_bytes=2048)

    # 4) bf16 input (bf16 apply FMA on v6e/v7x, f32 apply on older chips)
    check(x.astype(jnp.bfloat16), params, 5e-2, 5e-2)

    print("KERNEL_OK")
</pallas_src>

<mosaic_0001>
module attributes {stable_mosaic.version = 11 : i64} {
  func.func @kernel(%arg0: i32, %arg1: memref<1x4x256xf32, #tpu.memory_space<vmem>>, %arg2: memref<4x2xf32, #tpu.memory_space<vmem>>, %arg3: memref<4x4xf32, #tpu.memory_space<vmem>>, %arg4: memref<1x4x256xf32, #tpu.memory_space<vmem>>, %arg5: memref<1x1x4xf32, #tpu.memory_space<vmem>>, %arg6: memref<1x1x4xf32, #tpu.memory_space<vmem>>) attributes {dimension_semantics = [#tpu.dimension_semantics<parallel>], iteration_bounds = array<i64: 2>, scalar_prefetch = 0 : i64, scratch_operands = 0 : i64, tpu.core_type = #tpu.core_type<tc>, window_params = [{transform_indices = @transform_0, window_bounds = array<i64: 1, 4, 256>}, {pipeline_mode = #tpu.pipeline_mode<synchronous>, transform_indices = @transform_1, window_bounds = array<i64: 4, 2>}, {pipeline_mode = #tpu.pipeline_mode<synchronous>, transform_indices = @transform_2, window_bounds = array<i64: 4, 4>}, {transform_indices = @transform_3, window_bounds = array<i64: 1, 4, 256>}, {transform_indices = @transform_4, window_bounds = array<i64: 1, 1, 4>}, {transform_indices = @transform_5, window_bounds = array<i64: 1, 1, 4>}]} {
    %c0 = arith.constant 0 : index
    %c0_0 = arith.constant 0 : index
    %c0_1 = arith.constant 0 : index
    %0 = vector.load %arg1[%c0, %c0_0, %c0_1] : memref<1x4x256xf32, #tpu.memory_space<vmem>>, vector<1x4x256xf32>
    %cst = arith.constant dense<0.000000e+00> : vector<1x4xf32>
    %1 = vector.multi_reduction <add>, %0, %cst [2] : vector<1x4x256xf32> to vector<1x4xf32>
    %2 = vector.shape_cast %1 : vector<1x4xf32> to vector<1x4x1xf32>
    %cst_2 = arith.constant dense<0.000000e+00> : vector<1x1xf32>
    %3 = vector.multi_reduction <add>, %2, %cst_2 [1] : vector<1x4x1xf32> to vector<1x1xf32>
    %4 = vector.shape_cast %3 : vector<1x1xf32> to vector<1x1x1xf32>
    %cst_3 = arith.constant 9.765625E-4 : f32
    %5 = vector.broadcast %cst_3 : f32 to vector<1x1x1xf32>
    %6 = arith.mulf %4, %5 : vector<1x1x1xf32>
    %c0_4 = arith.constant 0 : index
    %c0_5 = arith.constant 0 : index
    %c0_6 = arith.constant 0 : index
    %7 = vector.load %arg1[%c0_4, %c0_5, %c0_6] : memref<1x4x256xf32, #tpu.memory_space<vmem>>, vector<1x4x256xf32>
    %8 = vector.broadcast %6 : vector<1x1x1xf32> to vector<1x4x256xf32>
    %9 = arith.subf %7, %8 : vector<1x4x256xf32>
    %10 = arith.mulf %9, %9 : vector<1x4x256xf32>
    %cst_7 = arith.constant dense<0.000000e+00> : vector<1x4xf32>
    %11 = vector.multi_reduction <add>, %10, %cst_7 [2] : vector<1x4x256xf32> to vector<1x4xf32>
    %12 = vector.shape_cast %11 : vector<1x4xf32> to vector<1x4x1xf32>
    %cst_8 = arith.constant dense<0.000000e+00> : vector<1x1xf32>
    %13 = vector.multi_reduction <add>, %12, %cst_8 [1] : vector<1x4x1xf32> to vector<1x1xf32>
    %14 = vector.shape_cast %13 : vector<1x1xf32> to vector<1x1x1xf32>
    %15 = arith.mulf %6, %6 : vector<1x1x1xf32>
    %cst_9 = arith.constant 0.000000e+00 : f32
    %16 = vector.broadcast %cst_9 : f32 to vector<1x1x1xf32>
    %17 = arith.mulf %16, %15 : vector<1x1x1xf32>
    %18 = arith.subf %14, %17 : vector<1x1x1xf32>
    %cst_10 = arith.constant 9.765625E-4 : f32
    %19 = vector.broadcast %cst_10 : f32 to vector<1x1x1xf32>
    %20 = arith.mulf %18, %19 : vector<1x1x1xf32>
    %cst_11 = arith.constant 0.000000e+00 : f32
    %21 = vector.broadcast %cst_11 : f32 to vector<1x1x1xf32>
    %22 = arith.maximumf %20, %21 : vector<1x1x1xf32>
    %cst_12 = arith.constant 9.99999974E-6 : f32
    %23 = vector.broadcast %cst_12 : f32 to vector<1x1x1xf32>
    %24 = arith.addf %22, %23 : vector<1x1x1xf32>
    %25 = math.sqrt %24 : vector<1x1x1xf32>
    %cst_13 = arith.constant 1.000000e+00 : f32
    %26 = vector.broadcast %cst_13 : f32 to vector<1x1x1xf32>
    %27 = arith.divf %26, %25 : vector<1x1x1xf32>
    %c0_14 = arith.constant 0 : index
    %c0_15 = arith.constant 0 : index
    %28 = vector.load %arg2[%c0_14, %c0_15] : memref<4x2xf32, #tpu.memory_space<vmem>>, vector<4x2xf32>
    %29 = vector.extract_strided_slice %28 {offsets = [0, 0], sizes = [4, 1], strides = [1, 1]} : vector<4x2xf32> to vector<4x1xf32>
    %30 = vector.shape_cast %29 : vector<4x1xf32> to vector<1x4x1xf32>
    %31 = vector.extract_strided_slice %28 {offsets = [0, 1], sizes = [4, 1], strides = [1, 1]} : vector<4x2xf32> to vector<4x1xf32>
    %32 = vector.shape_cast %31 : vector<4x1xf32> to vector<1x4x1xf32>
    %33 = vector.broadcast %27 : vector<1x1x1xf32> to vector<1x4x1xf32>
    %34 = arith.mulf %30, %33 : vector<1x4x1xf32>
    %35 = vector.broadcast %6 : vector<1x1x1xf32> to vector<1x4x1xf32>
    %36 = arith.mulf %35, %34 : vector<1x4x1xf32>
    %37 = arith.subf %32, %36 : vector<1x4x1xf32>
    %c0_16 = arith.constant 0 : index
    %c0_17 = arith.constant 0 : index
    %c0_18 = arith.constant 0 : index
    %38 = vector.load %arg1[%c0_16, %c0_17, %c0_18] : memref<1x4x256xf32, #tpu.memory_space<vmem>>, vector<1x4x256xf32>
    %39 = vector.broadcast %34 : vector<1x4x1xf32> to vector<1x4x256xf32>
    %40 = arith.mulf %38, %39 : vector<1x4x256xf32>
    %41 = vector.broadcast %37 : vector<1x4x1xf32> to vector<1x4x256xf32>
    %42 = arith.addf %40, %41 : vector<1x4x256xf32>
    %c0_19 = arith.constant 0 : index
    %c0_20 = arith.constant 0 : index
    %c0_21 = arith.constant 0 : index
    %43 = vector.load %arg4[%c0_19, %c0_20, %c0_21] : memref<1x4x256xf32, #tpu.memory_space<vmem>>, vector<1x4x256xf32>
    tpu.vector_store %arg4[%c0_19, %c0_20, %c0_21], %42 {strides = array<i32>} : memref<1x4x256xf32, #tpu.memory_space<vmem>>, vector<1x4x256xf32>,
    %c0_22 = arith.constant 0 : index
    %c0_23 = arith.constant 0 : index
    %44 = vector.load %arg3[%c0_22, %c0_23] : memref<4x4xf32, #tpu.memory_space<vmem>>, vector<4x4xf32>
    %45 = vector.extract_strided_slice %44 {offsets = [0, 0], sizes = [1, 4], strides = [1, 1]} : vector<4x4xf32> to vector<1x4xf32>
    %46 = vector.shape_cast %45 : vector<1x4xf32> to vector<1x1x4xf32>
    %47 = vector.extract_strided_slice %44 {offsets = [1, 0], sizes = [1, 4], strides = [1, 1]} : vector<4x4xf32> to vector<1x4xf32>
    %48 = vector.shape_cast %47 : vector<1x4xf32> to vector<1x1x4xf32>
    %49 = vector.extract_strided_slice %44 {offsets = [2, 0], sizes = [1, 4], strides = [1, 1]} : vector<4x4xf32> to vector<1x4xf32>
    %50 = vector.shape_cast %49 : vector<1x4xf32> to vector<1x1x4xf32>
    %51 = vector.extract_strided_slice %44 {offsets = [3, 0], sizes = [1, 4], strides = [1, 1]} : vector<4x4xf32> to vector<1x4xf32>
    %52 = vector.shape_cast %51 : vector<1x4xf32> to vector<1x1x4xf32>
    %53 = vector.broadcast %25 : vector<1x1x1xf32> to vector<1x1x4xf32>
    %54 = arith.mulf %46, %53 : vector<1x1x4xf32>
    %55 = arith.addf %54, %48 : vector<1x1x4xf32>
    %c0_24 = arith.constant 0 : index
    %c0_25 = arith.constant 0 : index
    %c0_26 = arith.constant 0 : index
    %56 = vector.load %arg5[%c0_24, %c0_25, %c0_26] : memref<1x1x4xf32, #tpu.memory_space<vmem>>, vector<1x1x4xf32>
    tpu.vector_store %arg5[%c0_24, %c0_25, %c0_26], %55 {strides = array<i32>} : memref<1x1x4xf32, #tpu.memory_space<vmem>>, vector<1x1x4xf32>,
    %57 = vector.broadcast %6 : vector<1x1x1xf32> to vector<1x1x4xf32>
    %58 = arith.mulf %50, %57 : vector<1x1x4xf32>
    %59 = arith.addf %58, %52 : vector<1x1x4xf32>
    %c0_27 = arith.constant 0 : index
    %c0_28 = arith.constant 0 : index
    %c0_29 = arith.constant 0 : index
    %60 = vector.load %arg6[%c0_27, %c0_28, %c0_29] : memref<1x1x4xf32, #tpu.memory_space<vmem>>, vector<1x1x4xf32>
    tpu.vector_store %arg6[%c0_27, %c0_28, %c0_29], %59 {strides = array<i32>} : memref<1x1x4xf32, #tpu.memory_space<vmem>>, vector<1x1x4xf32>,
    return
  }
  func.func @transform_0(%arg0: i32) -> (i32, i32, i32) {
    %c0_i32 = arith.constant 0 : i32
    %c0_i32_0 = arith.constant 0 : i32
    %c0_i32_1 = arith.constant 0 : i32
    return %arg0, %c0_i32, %c0_i32_0 : i32, i32, i32
  }
  func.func @transform_1(%arg0: i32) -> (i32, i32) {
    %c0_i32 = arith.constant 0 : i32
    %c0_i32_0 = arith.constant 0 : i32
    %c0_i32_1 = arith.constant 0 : i32
    return %c0_i32, %c0_i32_0 : i32, i32
  }
  func.func @transform_2(%arg0: i32) -> (i32, i32) {
    %c0_i32 = arith.constant 0 : i32
    %c0_i32_0 = arith.constant 0 : i32
    %c0_i32_1 = arith.constant 0 : i32
    return %c0_i32, %c0_i32_0 : i32, i32
  }
  func.func @transform_3(%arg0: i32) -> (i32, i32, i32) {
    %c0_i32 = arith.constant 0 : i32
    %c0_i32_0 = arith.constant 0 : i32
    %c0_i32_1 = arith.constant 0 : i32
    return %arg0, %c0_i32, %c0_i32_0 : i32, i32, i32
  }
  func.func @transform_4(%arg0: i32) -> (i32, i32, i32) {
    %c0_i32 = arith.constant 0 : i32
    %c0_i32_0 = arith.constant 0 : i32
    %c0_i32_1 = arith.constant 0 : i32
    return %arg0, %c0_i32, %c0_i32_0 : i32, i32, i32
  }
  func.func @transform_5(%arg0: i32) -> (i32, i32, i32) {
    %c0_i32 = arith.constant 0 : i32
    %c0_i32_0 = arith.constant 0 : i32
    %c0_i32_1 = arith.constant 0 : i32
    return %arg0, %c0_i32, %c0_i32_0 : i32, i32, i32
  }
}

</mosaic_0001>

<llo_original>
// kernel: tpu_custom_call.1
$region0: #{tpu_custom_call.1}
  #allocation0 [shape = 'u32[]', space=smem, size = 0x4, offset = 0x4, fixed_abs, tag = 'smem constant byte address 0x4 - core index']
  #allocation1 [shape = 'u32[144,128]{1,0:T(1,128)}', space=vmem, size = 0x12000, scoped, tag = 'internal scratch']
  %s0 = inlined_call_operand.hbm [shape: f32[2,4,256], index: 0, kind: input, shape index: {}]
  %s1 = inlined_call_operand.vmem [shape: f32[4,2], index: 1, kind: input, shape index: {}]
  %s2 = inlined_call_operand.vmem [shape: f32[4,4], index: 2, kind: input, shape index: {}]
  %s3 = inlined_call_operand.hbm [shape: f32[2,4,256], index: 3, kind: output, shape index: {0}]
  %s4 = inlined_call_operand.hbm [shape: f32[2,1,4], index: 4, kind: output, shape index: {1}]
  %s5 = inlined_call_operand.hbm [shape: f32[2,1,4], index: 5, kind: output, shape index: {2}]
  %6 = xla_tuple %s3, %s4, %s5
  %s7 = sld [smem:[#allocation0]]
  $region65: #{tpu_custom_call.1} parent=0
    _
  %s9 = ssub.s32 1, %s7
  %s10 = scalar_select 0, %s9, %s7
  $region1: #{tpu_custom_call.1} parent=0
    #allocation2 [shape = 'u8[8192]{0}', space=vmem, size = 0x2000, scoped, tag = 'input window, operand 0']
    #allocation3 [shape = 's32[2]{0}', space=sflag, size = 0x8, scoped, tag = 'scoped memory for tpu_custom_call.1']
    #allocation4 [shape = 's32[2]{0}', space=sflag, size = 0x8, scoped, tag = 'scoped memory for tpu_custom_call.1']
    #allocation5 [shape = 'u8[8192]{0}', space=vmem, size = 0x2000, scoped, tag = 'output window, operand 0']
    #allocation6 [shape = 'u8[1024]{0}', space=vmem, size = 0x400, scoped, tag = 'output window, operand 1']
    #allocation7 [shape = 's32[2]{0}', space=sflag, size = 0x8, scoped, tag = 'scoped memory for tpu_custom_call.1']
    #allocation8 [shape = 'u8[1024]{0}', space=vmem, size = 0x400, scoped, tag = 'output window, operand 2']
    %11 = vsyncpa [#allocation3], 0
    %s12 = scalar_lea.sflag [#allocation3], 1
    %13 = vsyncpa %s12, 0
    %14 = vsyncpa [#allocation4], 0
    %s15 = scalar_lea.sflag [#allocation4], 1
    %16 = vsyncpa %s15, 0
    %17 = vsyncpa [#allocation7], 0
    %s18 = scalar_lea.sflag [#allocation7], 1
    %19 = vsyncpa %s18, 0
    loop: start=0, step=1, limit=4
    $region2: #{tpu_custom_call.1} parent=1 // loop_pre_header
      _
    $region3: #{tpu_custom_call.1} parent=1 // loop_header
      %s21 = sphi 0, %s25
      %p22 = scmp.ge.s32.totalorder %s21, 4
      %s31 = sphi 0, %s33
      %s34 = sphi 0, %s31
      %s35 = sphi 0, %s34
      %s51 = sphi 0, %s35
      %s55 = sphi 0, %s55
      %s57 = sphi 0, %s55
      %s58 = sphi 0, %s57
      %s72 = sphi 0, %s58
      %s76 = sphi 0, %s76
      %s78 = sphi 0, %s76
      %s79 = sphi 0, %s78
      %s93 = sphi 0, %s79
      %s99 = sphi 0, %s101
      %s102 = sphi 0, %s99
      %s103 = sphi 0, %s102
      %s119 = sphi 0, %s103
      %s125 = sphi 0, %s127
      %s128 = sphi 0, %s125
      %s129 = sphi 0, %s128
      %s145 = sphi 0, %s129
      %s151 = sphi 0, %s153
      %s154 = sphi 0, %s151
      %s155 = sphi 0, %s154
      %s171 = sphi 0, %s155
    $region4: #{tpu_custom_call.1} parent=1 // loop_header_branch
      %24 = sbr.rel (%p22) target = $region8
    $region5: #{tpu_custom_call.1} parent=1 // loop_body
      %s26 = ssub.s32 %s21, 1
      %s27 = ssub.s32 %s21, 2
      %s28 = sadd.s32 %s21, 1
      %s29 = ssub.s32 %s21, %s28
      %p30 = scmp.eq.s32.totalorder %s29, 0
      %s32 = sadd.s32 %s31, 1
      %s33 = scalar_select %p30, %s31, %s32
      %p36 = pneg %p30
      %p37 = scmp.eq.s32.totalorder %s21, 1
      %p38 = por %p36, %p37
      %p39 = scmp.ne.s32.totalorder %s31, %s34
      %p40 = scmp.eq.s32.totalorder %s21, 0
      %p41 = por %p39, %p40
      %p42 = scmp.ne.s32.totalorder %s31, %s34
      %p43 = scmp.eq.s32.totalorder %s26, 1
      %p44 = por %p42, %p43
      %p45 = scmp.ne.s32.totalorder %s34, %s35
      %p46 = scmp.eq.s32.totalorder %s26, 0
      %p47 = por %p45, %p46
      %p48 = scmp.ne.s32.totalorder %s34, %s35
      %p49 = scmp.eq.s32.totalorder %s27, 1
      %p50 = por %p48, %p49
      %p52 = scmp.ne.s32.totalorder %s35, %s51
      %p53 = scmp.eq.s32.totalorder %s27, 0
      %p54 = por %p52, %p53
      %s56 = sadd.s32 %s55, 1
      %p59 = scmp.eq.s32.totalorder %s21, 1
      %p60 = scmp.ne.s32.totalorder %s55, %s57
      %p61 = scmp.eq.s32.totalorder %s21, 0
      %p62 = por %p60, %p61
      %p63 = scmp.ne.s32.totalorder %s55, %s57
      %p64 = scmp.eq.s32.totalorder %s26, 1
      %p65 = por %p63, %p64
      %p66 = scmp.ne.s32.totalorder %s57, %s58
      %p67 = scmp.eq.s32.totalorder %s26, 0
      %p68 = por %p66, %p67
      %p69 = scmp.ne.s32.totalorder %s57, %s58
      %p70 = scmp.eq.s32.totalorder %s27, 1
      %p71 = por %p69, %p70
      %p73 = scmp.ne.s32.totalorder %s58, %s72
      %p74 = scmp.eq.s32.totalorder %s27, 0
      %p75 = por %p73, %p74
      %s77 = sadd.s32 %s76, 1
      %p80 = scmp.eq.s32.totalorder %s21, 1
      %p81 = scmp.ne.s32.totalorder %s76, %s78
      %p82 = scmp.eq.s32.totalorder %s21, 0
      %p83 = por %p81, %p82
      %p84 = scmp.ne.s32.totalorder %s76, %s78
      %p85 = scmp.eq.s32.totalorder %s26, 1
      %p86 = por %p84, %p85
      %p87 = scmp.ne.s32.totalorder %s78, %s79
      %p88 = scmp.eq.s32.totalorder %s26, 0
      %p89 = por %p87, %p88
      %p90 = scmp.ne.s32.totalorder %s78, %s79
      %p91 = scmp.eq.s32.totalorder %s27, 1
      %p92 = por %p90, %p91
      %p94 = scmp.ne.s32.totalorder %s79, %s93
      %p95 = scmp.eq.s32.totalorder %s27, 0
      %p96 = por %p94, %p95
      %s97 = ssub.s32 %s21, %s28
      %p98 = scmp.eq.s32.totalorder %s97, 0
      %s100 = sadd.s32 %s99, 1
      %s101 = scalar_select %p98, %s99, %s100
      %p104 = pneg %p98
      %p105 = scmp.eq.s32.totalorder %s21, 1
      %p106 = por %p104, %p105
      %p107 = scmp.ne.s32.totalorder %s99, %s102
      %p108 = scmp.eq.s32.totalorder %s21, 0
      %p109 = por %p107, %p108
      %p110 = scmp.ne.s32.totalorder %s99, %s102
      %p111 = scmp.eq.s32.totalorder %s26, 1
      %p112 = por %p110, %p111
      %p113 = scmp.ne.s32.totalorder %s102, %s103
      %p114 = scmp.eq.s32.totalorder %s26, 0
      %p115 = por %p113, %p114
      %p116 = scmp.ne.s32.totalorder %s102, %s103
      %p117 = scmp.eq.s32.totalorder %s27, 1
      %p118 = por %p116, %p117
      %p120 = scmp.ne.s32.totalorder %s103, %s119
      %p121 = scmp.eq.s32.totalorder %s27, 0
      %p122 = por %p120, %p121
      %s123 = ssub.s32 %s21, %s28
      %p124 = scmp.eq.s32.totalorder %s123, 0
      %s126 = sadd.s32 %s125, 1
      %s127 = scalar_select %p124, %s125, %s126
      %p130 = pneg %p124
      %p131 = scmp.eq.s32.totalorder %s21, 1
      %p132 = por %p130, %p131
      %p133 = scmp.ne.s32.totalorder %s125, %s128
      %p134 = scmp.eq.s32.totalorder %s21, 0
      %p135 = por %p133, %p134
      %p136 = scmp.ne.s32.totalorder %s125, %s128
      %p137 = scmp.eq.s32.totalorder %s26, 1
      %p138 = por %p136, %p137
      %p139 = scmp.ne.s32.totalorder %s128, %s129
      %p140 = scmp.eq.s32.totalorder %s26, 0
      %p141 = por %p139, %p140
      %p142 = scmp.ne.s32.totalorder %s128, %s129
      %p143 = scmp.eq.s32.totalorder %s27, 1
      %p144 = por %p142, %p143
      %p146 = scmp.ne.s32.totalorder %s129, %s145
      %p147 = scmp.eq.s32.totalorder %s27, 0
      %p148 = por %p146, %p147
      %s149 = ssub.s32 %s21, %s28
      %p150 = scmp.eq.s32.totalorder %s149, 0
      %s152 = sadd.s32 %s151, 1
      %s153 = scalar_select %p150, %s151, %s152
      %p156 = pneg %p150
      %p157 = scmp.eq.s32.totalorder %s21, 1
      %p158 = por %p156, %p157
      %p159 = scmp.ne.s32.totalorder %s151, %s154
      %p160 = scmp.eq.s32.totalorder %s21, 0
      %p161 = por %p159, %p160
      %p162 = scmp.ne.s32.totalorder %s151, %s154
      %p163 = scmp.eq.s32.totalorder %s26, 1
      %p164 = por %p162, %p163
      %p165 = scmp.ne.s32.totalorder %s154, %s155
      %p166 = scmp.eq.s32.totalorder %s26, 0
      %p167 = por %p165, %p166
      %p168 = scmp.ne.s32.totalorder %s154, %s155
      %p169 = scmp.eq.s32.totalorder %s27, 1
      %p170 = por %p168, %p169
      %p172 = scmp.ne.s32.totalorder %s155, %s171
      %p173 = scmp.eq.s32.totalorder %s27, 0
      %p174 = por %p172, %p173
      %p175 = scmp.le.s32.totalorder 1, %s21
      %p176 = scmp.lt.s32.totalorder %s21, 3
      %p177 = pnand %p175, %p176
      %p178 = pneg %p177
      // Predicated region
      $region9: #{tpu_custom_call.1} parent=5 // pred_check
        _
      $region10: #{tpu_custom_call.1} parent=5 // pred_check_branch
        %180 = sbr.rel (%p177) target = $region12
      $region11: #{tpu_custom_call.1} parent=5 // pred_region
        %s181 = ssub.s32 %s21, 1
        // Predicated region
        $region13: #{tpu_custom_call.1} parent=11 // pred_check
          %p182 = pneg %p68
        $region14: #{tpu_custom_call.1} parent=11 // pred_check_branch
          %184 = sbr.rel (%p182) target = $region16
        $region15: #{tpu_custom_call.1} parent=11 // pred_region
          _
        $region16: #{tpu_custom_call.1} parent=11 // pred_fallthru
          _
        // Predicated region
        $region17: #{tpu_custom_call.1} parent=11 // pred_check
          %p185 = pneg %p89
        $region18: #{tpu_custom_call.1} parent=11 // pred_check_branch
          %187 = sbr.rel (%p185) target = $region20
        $region19: #{tpu_custom_call.1} parent=11 // pred_region
          _
        $region20: #{tpu_custom_call.1} parent=11 // pred_fallthru
          _
      $region12: #{tpu_custom_call.1} parent=5 // pred_fallthru
        _
      %p188 = scmp.lt.s32.totalorder %s21, 2
      // Predicated region
      $region21: #{tpu_custom_call.1} parent=5 // pred_check
        %p189 = pneg %p188
      $region22: #{tpu_custom_call.1} parent=5 // pred_check_branch
        %191 = sbr.rel (%p189) target = $region24
      $region23: #{tpu_custom_call.1} parent=5 // pred_region
        // Predicated region
        $region25: #{tpu_custom_call.1} parent=23 // pred_check
          %p192 = pneg %p41
        $region26: #{tpu_custom_call.1} parent=23 // pred_check_branch
          %194 = sbr.rel (%p192) target = $region28
        $region27: #{tpu_custom_call.1} parent=23 // pred_region
          %s195 = sand.u32 %s31, 1
          %s196 = scalar_lea.sflag [#allocation3], %s195
          %s197 = sand.u32 %s31, 1
          %s198 = smul.addr %s197, 8
          %s199 = scalar_lea.vmem [#allocation2], %s198
          %s201 = ssub.s32 128, 128
          %202 = vsyncadd %s196, %s201
          %s203 = smul.addr %s21, 2
          %s204 = smul.addr %s203, 64
          %s205 = scalar_lea.hbm %s0, %s204
          %s207 = sshll.u32 %s199, 4
          %s208 = int_to_ptr.vmem [resolvable:$true] %s207
          %210 = dma.hbm_to_vmem [thread:$0]  %s205, 128, %s208, %s196
        $region28: #{tpu_custom_call.1} parent=23 // pred_fallthru
          _
      $region24: #{tpu_custom_call.1} parent=5 // pred_fallthru
        _
      %p211 = scmp.le.s32.totalorder 1, %s21
      %p212 = scmp.lt.s32.totalorder %s21, 3
      %p213 = pnand %p211, %p212
      %p214 = pneg %p213
      // Predicated region
      $region29: #{tpu_custom_call.1} parent=5 // pred_check
        _
      $region30: #{tpu_custom_call.1} parent=5 // pred_check_branch
        %216 = sbr.rel (%p213) target = $region32
      $region31: #{tpu_custom_call.1} parent=5 // pred_region
        %s217 = ssub.s32 %s21, 1
        %s218 = sand.u32 %s34, 1
        %s219 = scalar_lea.sflag [#allocation3], %s218
        %s220 = sand.u32 %s34, 1
        %s221 = smul.addr %s220, 8
        %s222 = scalar_lea.vmem [#allocation2], %s221
        // Predicated region
        $region33: #{tpu_custom_call.1} parent=31 // pred_check
          %p223 = pneg %p47
        $region34: #{tpu_custom_call.1} parent=31 // pred_check_branch
          %225 = sbr.rel (%p223) target = $region36
        $region35: #{tpu_custom_call.1} parent=31 // pred_region
          %226 = dma.done %s219, 128
        $region36: #{tpu_custom_call.1} parent=31 // pred_fallthru
          _
        %s227 = sand.u32 %s34, 1
        %s228 = scalar_lea.sflag [#allocation3], %s227
        %s229 = sand.u32 %s34, 1
        %s230 = smul.addr %s229, 8
        %s231 = scalar_lea.vmem [#allocation2], %s230
        %p232 = pneg %p47
        %p233 = pneg %p44
        %p234 = pneg %p68
        %p235 = pneg %p65
        %p236 = pneg %p89
        %p237 = pneg %p86
        %p238 = pneg %p115
        %p239 = pneg %p112
        %s240 = sand.u32 %s102, 1
        %s241 = scalar_lea.sflag [#allocation4], %s240
        %s242 = sand.u32 %s102, 1
        %s243 = smul.addr %s242, 8
        %s244 = scalar_lea.vmem [#allocation5], %s243
        %p245 = pneg %p141
        %p246 = pneg %p138
        %s247 = sand.u32 %s26, 1
        %s248 = scalar_lea.sflag [#allocation7], %s247
        %s249 = sand.u32 %s128, 1
        %s250 = scalar_lea.vmem [#allocation6], %s249
        %p251 = pneg %p167
        %p252 = pneg %p164
        %s253 = sand.u32 %s26, 1
        %s254 = scalar_lea.sflag [#allocation7], %s253
        %s255 = sand.u32 %s154, 1
        %s256 = scalar_lea.vmem [#allocation8], %s255
        %v257 = vld [vmem:[%s222] sm:$0xff]
        %v259 = vcombine.high %v257, %v257
        %vm261 = vcmask 1043456
        %v262 = vsel %vm261, %v257, 0.0
        %v263 = vsel %vm261, %v259, 0.0
        %v264 = vadd.f32 %v262, %v263
        %265 = vadd.xlane.f32.xlu0 %v264
        %v266 = vpop.xlane.xlu0 %265
        %v267 = vsel %vm261, %v266, 0.0
        %v268 = vrot.slane %v267, 4
        %v269 = vadd.f32 %v267, %v268
        %v270 = vrot.slane %v269, 2
        %v271 = vadd.f32 %v269, %v270
        %v272 = vrot.slane %v271, 1
        %v273 = vadd.f32 %v271, %v272
        %v274 = vmul.f32 %v273, 0.0009765625
        %v275 = vsub.f32 %v257, %v274
        %v276 = vmul.f32 %v275, %v275
        %v278 = vcombine.high %v276, %v276
        %v280 = vsel %vm261, %v276, 0.0
        %v281 = vsel %vm261, %v278, 0.0
        %v282 = vadd.f32 %v280, %v281
        %283 = vadd.xlane.f32.xlu0 %v282
        %v284 = vpop.xlane.xlu0 %283
        %v285 = vsel %vm261, %v284, 0.0
        %v286 = vrot.slane %v285, 4
        %v287 = vadd.f32 %v285, %v286
        %v288 = vrot.slane %v287, 2
        %v289 = vadd.f32 %v287, %v288
        %v290 = vrot.slane %v289, 1
        %v291 = vadd.f32 %v289, %v290
        %v292 = vmul.f32 %v274, %v274
        %v293 = vmul.f32 %v292, 0.0
        %v294 = vsub.f32 %v291, %v293
        %v295 = vmul.f32 %v294, 0.0009765625
        %v296 = vmax.f32 %v295, 0.0
        %v297 = vadd.f32 %v296, 1e-05
        %v298 = vrsqrt.pop %v297
        %v299 = vmul.f32 %v297, %v298
        %vm300 = vcmp.eq.f32.partialorder %v297, inf
        %v301 = vsel %vm300, %v297, %v299
        %vm302 = vcmp.eq.f32.partialorder %v297, 0.0
        %v303 = vand.u32 %v297, 2147483648
        %v304 = vsel %vm302, %v303, %v301
        %v305 = vrcp.pop %v304
        %v306 = vmul.f32 1.0, %v305
        %v307 = vld [vmem:[%s1] sm:$0xf]
        %v308 = vmul.f32 %v307, %v306
        %v309 = vmul.f32 %v274, %v308
        %311 = vrot.lane.b32.xlu0 %v309, 1
        %v312 = vpop.permute.xlu0 %311
        %v314 = vsub.f32 %v307, %v312
        %316 = vset.pattern.permute.xlu0 0
        %317 = vperm.xlu0 %316, %v308
        %v318 = vpop.permute.xlu0 %317
        %v320 = vunpack.c.l.s4 839922192
        %v321 = vunpack.c.0.s8 %v320
        %v322 = vlaneseq
        %v323 = vshrl.u32 %v322, 7
        %v324 = vsub.s32 %v321, %v323
        %v325 = vrot.slane %v318, %v324
        %v327 = vmul.f32 %v257, %v325
        %329 = vset.pattern.permute.xlu0 1
        %330 = vperm.xlu0 %329, %v314
        %v331 = vpop.permute.xlu0 %330
        %v333 = vunpack.c.l.s4 839922192
        %v334 = vunpack.c.0.s8 %v333
        %v335 = vlaneseq
        %v336 = vshrl.u32 %v335, 7
        %v337 = vsub.s32 %v334, %v336
        %v338 = vrot.slane %v331, %v337
        %v340 = vadd.f32 %v327, %v338
        %341 = vst [vmem:[%s244] sm:$0xff] %v340
        %v342 = vld [vmem:[%s2] sm:$0xf]
        %v343 = vmul.f32 %v342, %v304
        %v345 = vrot.slane %v342, 1
        %v347 = vadd.f32 %v343, %v345
        %vm348 = vcmask 24576
        %349 = vst.msk [vmem:[%s250] sm:$0x1] %vm348, %v347
        %v350 = vmul.f32 %v342, %v274
        %v351 = vadd.f32 %v350, %v345
        %vm352 = vcmask 26626
        %353 = vst.msk [vmem:[%s256 - $0x2] sm:$0x4] %vm352, %v351
        %s354 = sand.u32 %s102, 1
        %s355 = scalar_lea.sflag [#allocation4], %s354
        %s356 = sand.u32 %s102, 1
        %s357 = smul.addr %s356, 8
        %s358 = scalar_lea.vmem [#allocation5], %s357
        %s359 = sand.u32 %s26, 1
        %s360 = scalar_lea.sflag [#allocation7], %s359
        %s361 = sand.u32 %s128, 1
        %s362 = scalar_lea.vmem [#allocation6], %s361
        %s363 = sand.u32 %s26, 1
        %s364 = scalar_lea.sflag [#allocation7], %s363
        %s365 = sand.u32 %s154, 1
        %s366 = scalar_lea.vmem [#allocation8], %s365
        // Predicated region
        $region37: #{tpu_custom_call.1} parent=31 // pred_check
          %p367 = pneg %p112
        $region38: #{tpu_custom_call.1} parent=31 // pred_check_branch
          %369 = sbr.rel (%p367) target = $region40
        $region39: #{tpu_custom_call.1} parent=31 // pred_region
          %s371 = ssub.s32 128, 128
          %372 = vsyncadd %s355, %s371
          %s373 = smul.addr %s26, 2
          %s374 = smul.addr %s373, 64
          %s375 = scalar_lea.hbm %s3, %s374
          %s377 = sshll.u32 %s358, 4
          %s378 = int_to_ptr.vmem [resolvable:$true] %s377
          %380 = dma.vmem_to_hbm [thread:$0]  %s378, 128, %s375, %s355
        $region40: #{tpu_custom_call.1} parent=31 // pred_fallthru
          _
        // Predicated region
        $region41: #{tpu_custom_call.1} parent=31 // pred_check
          %p381 = pneg %p138
        $region42: #{tpu_custom_call.1} parent=31 // pred_check_branch
          %383 = sbr.rel (%p381) target = $region44
        $region43: #{tpu_custom_call.1} parent=31 // pred_region
          %s385 = ssub.s32 16, 16
          %386 = vsyncadd %s360, %s385
          %s387 = smul.addr %s26, 16
          %s388 = scalar_lea.hbm %s4, %s387
          %s390 = sshll.u32 %s362, 4
          %s391 = int_to_ptr.vmem [resolvable:$true] %s390
          %393 = dma.vmem_to_hbm [thread:$0]  %s391, 16, %s388, %s360
        $region44: #{tpu_custom_call.1} parent=31 // pred_fallthru
          _
        // Predicated region
        $region45: #{tpu_custom_call.1} parent=31 // pred_check
          %p394 = pneg %p164
        $region46: #{tpu_custom_call.1} parent=31 // pred_check_branch
          %396 = sbr.rel (%p394) target = $region48
        $region47: #{tpu_custom_call.1} parent=31 // pred_region
          %s398 = ssub.s32 16, 16
          %399 = vsyncadd %s364, %s398
          %s400 = smul.addr %s26, 16
          %s401 = scalar_lea.hbm %s5, %s400
          %s403 = sshll.u32 %s366, 4
          %s404 = int_to_ptr.vmem [resolvable:$true] %s403
          %406 = dma.vmem_to_hbm [thread:$0]  %s404, 16, %s401, %s364
        $region48: #{tpu_custom_call.1} parent=31 // pred_fallthru
          _
      $region32: #{tpu_custom_call.1} parent=5 // pred_fallthru
        _
      %p407 = scmp.le.s32.totalorder 2, %s21
      // Predicated region
      $region49: #{tpu_custom_call.1} parent=5 // pred_check
        %p408 = pneg %p407
      $region50: #{tpu_custom_call.1} parent=5 // pred_check_branch
        %410 = sbr.rel (%p408) target = $region52
      $region51: #{tpu_custom_call.1} parent=5 // pred_region
        %s411 = ssub.s32 %s21, 2
        // Predicated region
        $region53: #{tpu_custom_call.1} parent=51 // pred_check
          %p412 = pneg %p118
        $region54: #{tpu_custom_call.1} parent=51 // pred_check_branch
          %414 = sbr.rel (%p412) target = $region56
        $region55: #{tpu_custom_call.1} parent=51 // pred_region
          %s415 = sand.u32 %s103, 1
          %s416 = scalar_lea.sflag [#allocation4], %s415
          %s417 = sand.u32 %s103, 1
          %s418 = smul.addr %s417, 8
          %s419 = scalar_lea.vmem [#allocation5], %s418
          %420 = dma.done %s416, 128
        $region56: #{tpu_custom_call.1} parent=51 // pred_fallthru
          _
        // Predicated region
        $region57: #{tpu_custom_call.1} parent=51 // pred_check
          %p421 = pneg %p144
        $region58: #{tpu_custom_call.1} parent=51 // pred_check_branch
          %423 = sbr.rel (%p421) target = $region60
        $region59: #{tpu_custom_call.1} parent=51 // pred_region
          %s424 = sand.u32 %s27, 1
          %s425 = scalar_lea.sflag [#allocation7], %s424
          %s426 = sand.u32 %s129, 1
          %s427 = scalar_lea.vmem [#allocation6], %s426
          %428 = dma.done %s425, 16
        $region60: #{tpu_custom_call.1} parent=51 // pred_fallthru
          _
        // Predicated region
        $region61: #{tpu_custom_call.1} parent=51 // pred_check
          %p429 = pneg %p170
        $region62: #{tpu_custom_call.1} parent=51 // pred_check_branch
          %431 = sbr.rel (%p429) target = $region64
        $region63: #{tpu_custom_call.1} parent=51 // pred_region
          %s432 = sand.u32 %s27, 1
          %s433 = scalar_lea.sflag [#allocation7], %s432
          %s434 = sand.u32 %s155, 1
          %s435 = scalar_lea.vmem [#allocation8], %s434
          %436 = dma.done %s433, 16
        $region64: #{tpu_custom_call.1} parent=51 // pred_fallthru
          _
      $region52: #{tpu_custom_call.1} parent=5 // pred_fallthru
        _
    $region6: #{tpu_custom_call.1} parent=1 // loop_footer
      %s25 = sadd.s32 1, %s21
    $region7: #{tpu_custom_call.1} parent=1 // loop_footer_branch
      %20 = sbr.rel target = $region3
    $region8: #{tpu_custom_call.1} parent=1 // loop_exit
      _
    %437 = vsyncpa [#allocation3], 1
    %s438 = scalar_lea.sflag [#allocation3], 1
    %439 = vsyncpa %s438, 1
    %440 = vsyncpa [#allocation4], 1
    %s441 = scalar_lea.sflag [#allocation4], 1
    %442 = vsyncpa %s441, 1
    %443 = vsyncpa [#allocation7], 1
    %s444 = scalar_lea.sflag [#allocation7], 1
    %445 = vsyncpa %s444, 1

</llo_original>
